<compile_context>
chip_gen: v7x
topology: tpu7x:2x2x1
jax: 0.10.0
libtpu: 0.0.40
codegen_flags: <defaults>
</compile_context>

<pallas_src>
import jax
import jax.numpy as jnp
from jax.experimental import pallas as pl
from jax.experimental.pallas import tpu as pltpu

LANE = 128
SUBLANE = 8


def _round_up(x: int, m: int) -> int:
    return ((x + m - 1) // m) * m


def _as_f32(a: jax.Array) -> jax.Array:
    # Avoid a redundant pass over x when it is already f32.
    return a if a.dtype == jnp.float32 else a.astype(jnp.float32)


def _vmem_physical_bytes() -> int:
    """Physical VMEM for the current generation (v5e/v6e: 128 MiB, v7x: 64)."""
    try:
        info = pltpu.get_tpu_info()
        v = getattr(info, "vmem_capacity_bytes", None)
        if v:
            return int(v)
    except Exception:
        pass
    return 64 << 20  # conservative default (v7x)


# ----------------------------------------------------------------------------
# Fused kernel.  One row-tile of every feature set at a time:
#   x_refs[i] : (tile_n, F_i)   row tile of feature set i
#   w_refs[i] : (1, F_i)        relu'd weight row, resident across the grid
#   o_ref     : (tile_n, S_out) per-set scores (lane-padded when S_out > S)
# Per-set score = sum over lanes of (x_i * w_i) — VPU multiply + XLU reduce.
# The kernel is HBM-bandwidth-bound, so VPU/XLU vs MXU is not the bottleneck.
# ----------------------------------------------------------------------------
def _make_kernel(num_sets: int, s_out: int):
    def kernel(*refs):
        x_refs = refs[:num_sets]
        w_refs = refs[num_sets:2 * num_sets]
        o_ref = refs[2 * num_sets]
        tile_n = o_ref.shape[0]

        cols = []
        for i in range(num_sets):
            prod = x_refs[i][...] * w_refs[i][...]          # (tile_n, F_i)
            cols.append(jnp.sum(prod, axis=1, keepdims=True))  # (tile_n, 1)
        if s_out > num_sets:  # lane-dense padding columns (sliced off outside)
            cols.append(jnp.zeros((tile_n, s_out - num_sets), jnp.float32))
        o_ref[...] = jnp.concatenate(cols, axis=1).astype(o_ref.dtype)

    return kernel


def _choose_tile_n(n: int, feature_dims, s_out: int):
    """Row-tile + vmem_limit, budgeted against this generation's VMEM."""
    physical = _vmem_physical_bytes()
    budget = physical // 2  # leave headroom for compiler scratch / misc

    # Per-row VMEM: double-buffered f32 x tiles (each set's lanes pad to 128)
    # plus the double-buffered output tile.
    in_cols = sum(_round_up(max(f, 1), LANE) for f in feature_dims)
    out_cols = _round_up(max(s_out, 1), LANE)
    bytes_per_row = 2 * 4 * (in_cols + out_cols)
    max_rows = max(SUBLANE, (budget // bytes_per_row) // SUBLANE * SUBLANE)

    # Prefer >=512 rows (~85% of the HBM roofline), but cap so large N gives
    # ~8 grid steps for BlockSpec pipelining to overlap DMA with compute.
    want = _round_up(max(pl.cdiv(n, 8), 1), SUBLANE)
    tile = max(min(512, max_rows), min(want, max_rows))
    tile = min(tile, 1024)
    tile = min(tile, _round_up(n, SUBLANE))
    tile = max(SUBLANE, (tile // SUBLANE) * SUBLANE)

    # v7x has 2 TensorCores: guarantee >=2 steps on the "parallel" N axis
    # whenever N is big enough to split (no-op cost on v5e/v6e).
    if pl.cdiv(n, tile) < 2 and n > 2 * SUBLANE:
        tile = max(SUBLANE, _round_up(pl.cdiv(n, 2), SUBLANE))

    weights_bytes = 2 * 4 * in_cols * SUBLANE  # resident (1, F_i) rows, generous
    usage = bytes_per_row * tile + weights_bytes
    vmem_limit = int(min(physical, max(32 << 20, usage + (16 << 20))))
    return tile, vmem_limit


# ----------------------------------------------------------------------------
# Module-level wrappers (parameters + forward), matching the PyTorch module.
# ----------------------------------------------------------------------------
def simple_model_init(feature_dims):
    """Deterministic init matching nn.Parameter(torch.ones(F_i, 1) / F_i)."""
    return [jnp.ones((f, 1), dtype=jnp.float32) / f for f in feature_dims]


def simple_model_forward(x_list, weights):
    assert len(x_list) == len(weights) and len(x_list) > 0
    s = len(x_list)
    n = int(x_list[0].shape[0])
    feature_dims = [int(x.shape[1]) for x in x_list]
    f_total = sum(feature_dims)

    # clamp(min=0) once in the wrapper (tiny arrays) and lay the weights out as
    # (1, F_i) rows so the kernel broadcasts along sublanes with no transpose.
    w_rows = [
        jnp.maximum(_as_f32(w_i).reshape(1, -1), 0.0) for w_i in weights
    ]
    x_f32 = [_as_f32(x_i) for x_i in x_list]

    # Lane-dense output (Option B) only when the zero-column writeback is cheap
    # relative to the input read; otherwise keep the narrow full-extent output.
    s_out = _round_up(s, LANE) if (f_total >= 512 and s < LANE) else s

    tile_n, vmem_limit = _choose_tile_n(n, feature_dims, s_out)
    grid = (pl.cdiv(n, tile_n),)

    in_specs = [pl.BlockSpec((tile_n, f_i), lambda i: (i, 0)) for f_i in feature_dims]
    in_specs += [pl.BlockSpec((1, f_i), lambda i: (0, 0)) for f_i in feature_dims]

    cost = pl.CostEstimate(
        flops=2 * n * f_total,                # useful flops only
        transcendentals=0,
        bytes_accessed=4 * (n * f_total + f_total + n * s_out),
    )

    out = pl.pallas_call(
        _make_kernel(s, s_out),
        out_shape=jax.ShapeDtypeStruct((n, s_out), jnp.float32),
        grid=grid,
        in_specs=in_specs,
        out_specs=pl.BlockSpec((tile_n, s_out), lambda i: (i, 0)),
        compiler_params=pltpu.CompilerParams(
            dimension_semantics=("parallel",),   # shard N across TCs on v7x
            vmem_limit_bytes=vmem_limit,
        ),
        cost_estimate=cost,
    )(*x_f32, *w_rows)

    return out if s_out == s else out[:, :s]


if __name__ == "__main__":
    key = jax.random.PRNGKey(0)

    # --- small test, shapes consistent with the module -----------------------
    N = 8
    feature_dims = [4, 6, 3]
    keys = jax.random.split(key, len(feature_dims))
    x_list = [
        jax.random.normal(k, (N, f), dtype=jnp.float32)
        for k, f in zip(keys, feature_dims)
    ]
    weights = simple_model_init(feature_dims)

    out = jax.block_until_ready(simple_model_forward(x_list, weights))
    ref = jnp.concatenate(
        [x_i @ jnp.maximum(w_i, 0.0) for x_i, w_i in zip(x_list, weights)],
        axis=-1,
    )
    assert out.shape == (N, len(feature_dims))
    assert jnp.allclose(out, ref, atol=1e-5, rtol=1e-5)

    # --- second check: multi-step grid (pipelined, 2 parallel steps) ---------
    N2 = 64
    feature_dims2 = [5, 13]
    keys2 = jax.random.split(jax.random.PRNGKey(1), len(feature_dims2) * 2)
    x_list2 = [
        jax.random.normal(keys2[i], (N2, f), dtype=jnp.float32)
        for i, f in enumerate(feature_dims2)
    ]
    weights2 = [
        jax.random.normal(keys2[len(feature_dims2) + i], (f, 1), jnp.float32)
        for i, f in enumerate(feature_dims2)
    ]
    out2 = jax.block_until_ready(simple_model_forward(x_list2, weights2))
    ref2 = jnp.concatenate(
        [x_i @ jnp.maximum(w_i, 0.0) for x_i, w_i in zip(x_list2, weights2)],
        axis=-1,
    )
    assert out2.shape == (N2, len(feature_dims2))
    assert jnp.allclose(out2, ref2, atol=1e-5, rtol=1e-5)

    print("KERNEL_OK")
</pallas_src>

<mosaic_0001>
module attributes {stable_mosaic.version = 11 : i64} {
  func.func @kernel(%arg0: i32, %arg1: memref<8x4xf32, #tpu.memory_space<vmem>>, %arg2: memref<8x6xf32, #tpu.memory_space<vmem>>, %arg3: memref<8x3xf32, #tpu.memory_space<vmem>>, %arg4: memref<1x4xf32, #tpu.memory_space<vmem>>, %arg5: memref<1x6xf32, #tpu.memory_space<vmem>>, %arg6: memref<1x3xf32, #tpu.memory_space<vmem>>, %arg7: memref<8x3xf32, #tpu.memory_space<vmem>>) attributes {dimension_semantics = [#tpu.dimension_semantics<parallel>], iteration_bounds = array<i64: 1>, scalar_prefetch = 0 : i64, scratch_operands = 0 : i64, tpu.core_type = #tpu.core_type<tc>, window_params = [{transform_indices = @transform_0, window_bounds = array<i64: 8, 4>}, {transform_indices = @transform_1, window_bounds = array<i64: 8, 6>}, {transform_indices = @transform_2, window_bounds = array<i64: 8, 3>}, {pipeline_mode = #tpu.pipeline_mode<synchronous>, transform_indices = @transform_3, window_bounds = array<i64: 1, 4>}, {pipeline_mode = #tpu.pipeline_mode<synchronous>, transform_indices = @transform_4, window_bounds = array<i64: 1, 6>}, {pipeline_mode = #tpu.pipeline_mode<synchronous>, transform_indices = @transform_5, window_bounds = array<i64: 1, 3>}, {transform_indices = @transform_6, window_bounds = array<i64: 8, 3>}]} {
    %c0 = arith.constant 0 : index
    %c0_0 = arith.constant 0 : index
    %0 = vector.load %arg1[%c0, %c0_0] : memref<8x4xf32, #tpu.memory_space<vmem>>, vector<8x4xf32>
    %c0_1 = arith.constant 0 : index
    %c0_2 = arith.constant 0 : index
    %1 = vector.load %arg4[%c0_1, %c0_2] : memref<1x4xf32, #tpu.memory_space<vmem>>, vector<1x4xf32>
    %2 = vector.broadcast %1 : vector<1x4xf32> to vector<8x4xf32>
    %3 = arith.mulf %0, %2 : vector<8x4xf32>
    %cst = arith.constant dense<0.000000e+00> : vector<8xf32>
    %4 = vector.multi_reduction <add>, %3, %cst [1] : vector<8x4xf32> to vector<8xf32>
    %5 = vector.shape_cast %4 : vector<8xf32> to vector<8x1xf32>
    %c0_3 = arith.constant 0 : index
    %c0_4 = arith.constant 0 : index
    %6 = vector.load %arg2[%c0_3, %c0_4] : memref<8x6xf32, #tpu.memory_space<vmem>>, vector<8x6xf32>
    %c0_5 = arith.constant 0 : index
    %c0_6 = arith.constant 0 : index
    %7 = vector.load %arg5[%c0_5, %c0_6] : memref<1x6xf32, #tpu.memory_space<vmem>>, vector<1x6xf32>
    %8 = vector.broadcast %7 : vector<1x6xf32> to vector<8x6xf32>
    %9 = arith.mulf %6, %8 : vector<8x6xf32>
    %cst_7 = arith.constant dense<0.000000e+00> : vector<8xf32>
    %10 = vector.multi_reduction <add>, %9, %cst_7 [1] : vector<8x6xf32> to vector<8xf32>
    %11 = vector.shape_cast %10 : vector<8xf32> to vector<8x1xf32>
    %c0_8 = arith.constant 0 : index
    %c0_9 = arith.constant 0 : index
    %12 = vector.load %arg3[%c0_8, %c0_9] : memref<8x3xf32, #tpu.memory_space<vmem>>, vector<8x3xf32>
    %c0_10 = arith.constant 0 : index
    %c0_11 = arith.constant 0 : index
    %13 = vector.load %arg6[%c0_10, %c0_11] : memref<1x3xf32, #tpu.memory_space<vmem>>, vector<1x3xf32>
    %14 = vector.broadcast %13 : vector<1x3xf32> to vector<8x3xf32>
    %15 = arith.mulf %12, %14 : vector<8x3xf32>
    %cst_12 = arith.constant dense<0.000000e+00> : vector<8xf32>
    %16 = vector.multi_reduction <add>, %15, %cst_12 [1] : vector<8x3xf32> to vector<8xf32>
    %17 = vector.shape_cast %16 : vector<8xf32> to vector<8x1xf32>
    %18 = tpu.concatenate %5, %11, %17 in 1 : vector<8x1xf32>, vector<8x1xf32>, vector<8x1xf32> -> vector<8x3xf32>
    %c0_13 = arith.constant 0 : index
    %c0_14 = arith.constant 0 : index
    %19 = vector.load %arg7[%c0_13, %c0_14] : memref<8x3xf32, #tpu.memory_space<vmem>>, vector<8x3xf32>
    tpu.vector_store %arg7[%c0_13, %c0_14], %18 {strides = array<i32>} : memref<8x3xf32, #tpu.memory_space<vmem>>, vector<8x3xf32>,
    return
  }
  func.func @transform_0(%arg0: i32) -> (i32, i32) {
    %c0_i32 = arith.constant 0 : i32
    %c0_i32_0 = arith.constant 0 : i32
    return %arg0, %c0_i32 : i32, i32
  }
  func.func @transform_1(%arg0: i32) -> (i32, i32) {
    %c0_i32 = arith.constant 0 : i32
    %c0_i32_0 = arith.constant 0 : i32
    return %arg0, %c0_i32 : i32, i32
  }
  func.func @transform_2(%arg0: i32) -> (i32, i32) {
    %c0_i32 = arith.constant 0 : i32
    %c0_i32_0 = arith.constant 0 : i32
    return %arg0, %c0_i32 : i32, i32
  }
  func.func @transform_3(%arg0: i32) -> (i32, i32) {
    %c0_i32 = arith.constant 0 : i32
    %c0_i32_0 = arith.constant 0 : i32
    %c0_i32_1 = arith.constant 0 : i32
    return %c0_i32, %c0_i32_0 : i32, i32
  }
  func.func @transform_4(%arg0: i32) -> (i32, i32) {
    %c0_i32 = arith.constant 0 : i32
    %c0_i32_0 = arith.constant 0 : i32
    %c0_i32_1 = arith.constant 0 : i32
    return %c0_i32, %c0_i32_0 : i32, i32
  }
  func.func @transform_5(%arg0: i32) -> (i32, i32) {
    %c0_i32 = arith.constant 0 : i32
    %c0_i32_0 = arith.constant 0 : i32
    %c0_i32_1 = arith.constant 0 : i32
    return %c0_i32, %c0_i32_0 : i32, i32
  }
  func.func @transform_6(%arg0: i32) -> (i32, i32) {
    %c0_i32 = arith.constant 0 : i32
    %c0_i32_0 = arith.constant 0 : i32
    return %arg0, %c0_i32 : i32, i32
  }
}

</mosaic_0001>

<llo_original>
// kernel: tpu_custom_call.1
$region0: #{tpu_custom_call.1}
  #allocation0 [shape = 'u32[]', space=smem, size = 0x4, offset = 0x4, fixed_abs, tag = 'smem constant byte address 0x4 - core index']
  #allocation1 [shape = 'u32[144,128]{1,0:T(1,128)}', space=vmem, size = 0x12000, scoped, tag = 'internal scratch']
  %s0 = inlined_call_operand.vmem [shape: f32[8,4], index: 0, kind: input, shape index: {}]
  %s1 = inlined_call_operand.vmem [shape: f32[8,6], index: 1, kind: input, shape index: {}]
  %s2 = inlined_call_operand.vmem [shape: f32[8,3], index: 2, kind: input, shape index: {}]
  %s3 = inlined_call_operand.vmem [shape: f32[1,4], index: 3, kind: input, shape index: {}]
  %s4 = inlined_call_operand.vmem [shape: f32[1,6], index: 4, kind: input, shape index: {}]
  %s5 = inlined_call_operand.vmem [shape: f32[1,3], index: 5, kind: input, shape index: {}]
  %s6 = inlined_call_operand.vmem [shape: f32[8,3], index: 6, kind: output, shape index: {}]
  %s7 = sld [smem:[#allocation0]]
  $region34: #{tpu_custom_call.1} parent=0
    _
  %s9 = ssub.s32 1, %s7
  %s10 = scalar_select 0, %s9, %s7
  // Predicated region
  $region2: #{tpu_custom_call.1} parent=0 // pred_check
    _
  $region3: #{tpu_custom_call.1} parent=0 // pred_check_branch
    %12 = sbr.rel (0) target = $region5
  $region4: #{tpu_custom_call.1} parent=0 // pred_region
    _
  $region5: #{tpu_custom_call.1} parent=0 // pred_fallthru
    _
  // Predicated region
  $region6: #{tpu_custom_call.1} parent=0 // pred_check
    _
  $region7: #{tpu_custom_call.1} parent=0 // pred_check_branch
    %14 = sbr.rel (0) target = $region9
  $region8: #{tpu_custom_call.1} parent=0 // pred_region
    _
  $region9: #{tpu_custom_call.1} parent=0 // pred_fallthru
    _
  // Predicated region
  $region10: #{tpu_custom_call.1} parent=0 // pred_check
    _
  $region11: #{tpu_custom_call.1} parent=0 // pred_check_branch
    %16 = sbr.rel (0) target = $region13
  $region12: #{tpu_custom_call.1} parent=0 // pred_region
    _
  $region13: #{tpu_custom_call.1} parent=0 // pred_fallthru
    _
  // Predicated region
  $region14: #{tpu_custom_call.1} parent=0 // pred_check
    _
  $region15: #{tpu_custom_call.1} parent=0 // pred_check_branch
    %18 = sbr.rel (0) target = $region17
  $region16: #{tpu_custom_call.1} parent=0 // pred_region
    _
  $region17: #{tpu_custom_call.1} parent=0 // pred_fallthru
    _
  // Predicated region
  $region18: #{tpu_custom_call.1} parent=0 // pred_check
    _
  $region19: #{tpu_custom_call.1} parent=0 // pred_check_branch
    %20 = sbr.rel (0) target = $region21
  $region20: #{tpu_custom_call.1} parent=0 // pred_region
    _
  $region21: #{tpu_custom_call.1} parent=0 // pred_fallthru
    _
  // Predicated region
  $region22: #{tpu_custom_call.1} parent=0 // pred_check
    _
  $region23: #{tpu_custom_call.1} parent=0 // pred_check_branch
    %22 = sbr.rel (0) target = $region25
  $region24: #{tpu_custom_call.1} parent=0 // pred_region
    _
  $region25: #{tpu_custom_call.1} parent=0 // pred_fallthru
    _
  %v23 = vld [vmem:[%s0] sm:$0xff]
  %v24 = vld [vmem:[%s3] sm:$0x1]
  %v26 = vlaneseq
  %v27 = vshrl.u32 %v26, 7
  %v28 = vsub.s32 0, %v27
  %v29 = vrot.slane %v24, %v28
  %v31 = vmul.f32 %v23, %v29
  %vm32 = vcmask 31744
  %v33 = vsel %vm32, %v31, 0.0
  %34 = vadd.xlane.f32.xlu0 %v33
  %v35 = vpop.xlane.xlu0 %34
  %v36 = vld [vmem:[%s1] sm:$0xff]
  %v37 = vld [vmem:[%s4] sm:$0x1]
  %v39 = vlaneseq
  %v40 = vshrl.u32 %v39, 7
  %v41 = vsub.s32 0, %v40
  %v42 = vrot.slane %v37, %v41
  %v44 = vmul.f32 %v36, %v42
  %vm45 = vcmask 48128
  %v46 = vsel %vm45, %v44, 0.0
  %47 = vadd.xlane.f32.xlu0 %v46
  %v48 = vpop.xlane.xlu0 %47
  %v49 = vld [vmem:[%s2] sm:$0xff]
  %v50 = vld [vmem:[%s5] sm:$0x1]
  %v52 = vlaneseq
  %v53 = vshrl.u32 %v52, 7
  %v54 = vsub.s32 0, %v53
  %v55 = vrot.slane %v50, %v54
  %v57 = vmul.f32 %v49, %v55
  %vm58 = vcmask 23552
  %v59 = vsel %vm58, %v57, 0.0
  %60 = vadd.xlane.f32.xlu0 %v59
  %v61 = vpop.xlane.xlu0 %60
  %vm62 = vcmask 7168
  %v63 = vsel %vm62, %v35, %v48
  %vm64 = vcmask 15360
  %v65 = vsel %vm64, %v63, %v61
  %66 = vst.msk [vmem:[%s6] sm:$0xff] %vm58, %v65
  // Predicated region
  $region26: #{tpu_custom_call.1} parent=0 // pred_check
    _
  $region27: #{tpu_custom_call.1} parent=0 // pred_check_branch
    %68 = sbr.rel (0) target = $region29
  $region28: #{tpu_custom_call.1} parent=0 // pred_region
    _
  $region29: #{tpu_custom_call.1} parent=0 // pred_fallthru
    _
  // Predicated region
  $region30: #{tpu_custom_call.1} parent=0 // pred_check
    _
  $region31: #{tpu_custom_call.1} parent=0 // pred_check_branch
    %70 = sbr.rel (0) target = $region33
  $region32: #{tpu_custom_call.1} parent=0 // pred_region
    _
  $region33: #{tpu_custom_call.1} parent=0 // pred_fallthru
    _

</llo_original>
